<compile_context>
chip_gen: v7x
topology: tpu7x:2x2x1
jax: 0.10.0
libtpu: 0.0.40
codegen_flags: <defaults>
</compile_context>

<pallas_src>
import numpy as np
import jax
import jax.numpy as jnp
from jax.experimental import pallas as pl
from jax.experimental.pallas import tpu as pltpu


def region_clf_kernel(first_ref, last_ref, seq_ref, inv_len_ref,
                      w1_ref, b1_ref, w2_ref, b2_ref, w3_ref, b3_ref,
                      out_ref):
    # --- CatRepr mean: masked mean without a mask ---------------------------
    # seq is ZERO padded along its leading ragged axis by the wrapper, so the
    # plain f32 sum is exact; multiply by the host-precomputed 1/len.
    # Leading-axis reduce -> plain VALU vreg accumulation (4 slots), overlaps
    # with the MXU work; no XLU cross-sublane reduction.
    seq_sum = jnp.sum(seq_ref[...].astype(jnp.float32), axis=0)      # (D, TN)
    mean = seq_sum * inv_len_ref[...]                                # (D, TN)

    # --- fc head -------------------------------------------------------------
    # relu(cat([h0, h1, mean])) @ W1.T == W1 @ stack([relu(h0); relu(h1); relu(mean)])
    # in the transposed (lanes-on-N) layout.  The stack is a cheap sublane-axis
    # concat (D is a multiple of 8), giving one K=3D MXU contraction instead of
    # three K=D pushes.
    x = jnp.concatenate([
        jnp.maximum(first_ref[...].astype(jnp.float32), 0.0),
        jnp.maximum(last_ref[...].astype(jnp.float32), 0.0),
        jnp.maximum(mean, 0.0),
    ], axis=0)                                                       # (3D, TN)

    h = jnp.dot(w1_ref[...], x, preferred_element_type=jnp.float32) + b1_ref[...]
    h = jnp.maximum(h, 0.0)                                          # (H1, TN)
    h = jnp.dot(w2_ref[...], h, preferred_element_type=jnp.float32) + b2_ref[...]
    h = jnp.maximum(h, 0.0)                                          # (H2, TN)
    out = jnp.dot(w3_ref[...], h, preferred_element_type=jnp.float32) + b3_ref[...]

    # Single, full-block, lane-dense store (TN lanes wide).
    out_ref[...] = out.astype(out_ref.dtype)


def _bf16_round(a):
    """Round-trip through bf16 (host-side helper for building test data)."""
    return np.asarray(jnp.asarray(a, jnp.bfloat16).astype(jnp.float32))


def densify_regions(data_list, *, tile_n=128, input_dtype=jnp.bfloat16):
    """One-shot host-side ragged->dense conversion. Do this ONCE upstream and
    cache it - it must not sit on the per-forward critical path.

    Returns arrays in the lanes-on-N transposed layout the kernel expects:
      first_t  (D, Np)        input_dtype   hidden[0] per region
      last_t   (D, Np)        input_dtype   hidden[1] per region
      seq_t    (S_pad, D, Np) input_dtype   hidden[2], ZERO padded along axis 0
                                            (the kernel relies on this)
      inv_len  (1, Np)        f32           1 / true seq length (1.0 for pad cols)
    """
    n = len(data_list)
    d = int(np.asarray(data_list[0][0]).shape[-1])
    s_pad = max(int(np.asarray(h2).shape[0]) for _, _, h2 in data_list)
    n_pad = ((n + tile_n - 1) // tile_n) * tile_n

    first = np.zeros((d, n_pad), np.float32)
    last = np.zeros((d, n_pad), np.float32)
    seq = np.zeros((s_pad, d, n_pad), np.float32)
    inv_len = np.ones((1, n_pad), np.float32)
    for i, (h0, h1, h2) in enumerate(data_list):
        h2 = np.asarray(h2, np.float32)
        s = int(h2.shape[0])
        first[:, i] = np.asarray(h0, np.float32)
        last[:, i] = np.asarray(h1, np.float32)
        seq[:s, :, i] = h2
        inv_len[0, i] = 1.0 / float(s)

    return (jnp.asarray(first, input_dtype), jnp.asarray(last, input_dtype),
            jnp.asarray(seq, input_dtype), jnp.asarray(inv_len, jnp.float32),
            n, n_pad, d, s_pad)


def prepare_params(params):
    """One-time conversion of torch-layout fc params (cache the result).
    Weights stay in torch (out, in) layout - the transposed kernel uses them
    directly as W @ x; biases become broadcastable columns."""
    W1, b1, W2, b2, W3, b3 = params
    return (jnp.asarray(W1, jnp.float32),                   # (H1, 3D)
            jnp.asarray(b1, jnp.float32).reshape(-1, 1),    # (H1, 1)
            jnp.asarray(W2, jnp.float32),                   # (H2, H1)
            jnp.asarray(b2, jnp.float32).reshape(-1, 1),    # (H2, 1)
            jnp.asarray(W3, jnp.float32),                   # (C,  H2)
            jnp.asarray(b3, jnp.float32).reshape(-1, 1))    # (C,  1)


def region_clf_forward(dense, prepared, *, tile_n=128):
    """RegionCLF forward on pre-densified inputs + pre-converted params.

    tile_n sizing (per-generation):
      * keep it a multiple of 128 so the N/lane axis stays dense (unmasked vst)
      * the double-buffered seq tile is the VMEM constraint:
        2 * s_pad * D * tile_n * itemsize (+ 2x first/last + ~2x weights)
      * v7x : 64 MiB physical -> keep that total <= ~24 MiB and keep the grid
              at >= 2 steps so ("parallel",) can shard across its 2 TensorCores
      * v6e/v5e : single TC, 128 MiB physical -> prefer one maximal tile stream;
              raise vmem_limit_bytes toward ~96-112 MiB when tiles get large
              (defaults are only 32 MiB on v6e / 16 MiB on v5e)
    """
    first, last, seq, inv_len, n, n_pad, d, s_pad = dense
    w1, b1, w2, b2, w3, b3 = prepared
    h1_dim = w1.shape[0]
    h2_dim = w2.shape[0]
    n_classes = w3.shape[0]
    assert w1.shape[1] == 3 * d, (w1.shape, d)
    assert tile_n % 128 == 0 and n_pad % tile_n == 0, (tile_n, n_pad)

    grid = (n_pad // tile_n,)
    shared = lambda i: (0, 0)   # weights/biases: same (and only) block every step
    # TODO(synk): if H1/H2 grow, mark the weight specs pipeline_mode=pl.Buffered(1)
    # (constant index_map -> no second buffer needed) to give VMEM back to seq.

    # Explicit VMEM limit: enough for this launch, capped below v7x's 64 MiB.
    itemsize = jnp.dtype(seq.dtype).itemsize
    in_tile_bytes = ((s_pad * d + 2 * d) * tile_n * itemsize     # seq + first + last
                     + tile_n * 4                                # inv_len
                     + n_classes * tile_n * 4)                   # output
    weight_bytes = sum(int(np.prod(a.shape)) * a.dtype.itemsize for a in prepared)
    vmem_needed = 2 * (in_tile_bytes + weight_bytes)             # default double-buffering
    vmem_limit = int(min(max(4 * vmem_needed, 32 << 20), 48 << 20))

    out_t = pl.pallas_call(
        region_clf_kernel,
        out_shape=jax.ShapeDtypeStruct((n_classes, n_pad), jnp.float32),
        grid=grid,
        in_specs=[
            pl.BlockSpec((d, tile_n), lambda i: (0, i)),            # first_t
            pl.BlockSpec((d, tile_n), lambda i: (0, i)),            # last_t
            pl.BlockSpec((s_pad, d, tile_n), lambda i: (0, 0, i)),  # seq_t
            pl.BlockSpec((1, tile_n), lambda i: (0, i)),            # inv_len
            pl.BlockSpec((h1_dim, 3 * d), shared),                  # W1
            pl.BlockSpec((h1_dim, 1), shared),                      # b1
            pl.BlockSpec((h2_dim, h1_dim), shared),                 # W2
            pl.BlockSpec((h2_dim, 1), shared),                      # b2
            pl.BlockSpec((n_classes, h2_dim), shared),              # W3
            pl.BlockSpec((n_classes, 1), shared),                   # b3
        ],
        out_specs=pl.BlockSpec((n_classes, tile_n), lambda i: (0, i)),
        compiler_params=pltpu.CompilerParams(
            dimension_semantics=("parallel",),      # megacore-shardable on v7x
            vmem_limit_bytes=vmem_limit,
        ),
    )(first, last, seq, inv_len, w1, b1, w2, b2, w3, b3)

    # Lane-dense (C, Np) kernel output -> module layout (N, C).
    return out_t.T[:n]


def region_clf_reference(data_list, params):
    """Mirror of the PyTorch module on the same inputs:
    CatRepr in numpy f32, fc head in f32 jnp matmuls."""
    x = np.stack([
        np.concatenate([np.asarray(h0, np.float32),
                        np.asarray(h1, np.float32),
                        np.asarray(h2, np.float32).mean(axis=0)], axis=-1)
        for h0, h1, h2 in data_list
    ]).astype(np.float32)
    W1, b1, W2, b2, W3, b3 = params
    x = jnp.maximum(jnp.asarray(x), 0.0)
    x = jnp.maximum(x @ W1.T + b1, 0.0)
    x = jnp.maximum(x @ W2.T + b2, 0.0)
    return x @ W3.T + b3


if __name__ == "__main__":
    key = jax.random.PRNGKey(0)

    D = 32                  # per-tensor hidden width
    REGION_DIM = 3 * D      # CatRepr output width (L1 input)
    INPUT_DIM = 32          # L1 output
    HIDDEN2 = 64            # fixed by the module
    N_CLASSES = 4
    N_REGIONS = 250         # ragged batch of regions
    TILE_N = 128            # lane-dense region tile -> grid = (2,) here

    kf, kl, ks, kp = jax.random.split(key, 4)
    lens = [2 + (i % 8) for i in range(N_REGIONS)]            # ragged lengths 2..9
    s_max = max(lens)

    # Batched generation + one bf16 round-trip, so the kernel's bf16 input
    # storage is lossless w.r.t. the reference (fair correctness check).
    first_all = _bf16_round(jax.random.normal(kf, (N_REGIONS, D), jnp.float32))
    last_all = _bf16_round(jax.random.normal(kl, (N_REGIONS, D), jnp.float32))
    seq_all = _bf16_round(jax.random.normal(ks, (N_REGIONS, s_max, D), jnp.float32))

    # Ragged per-region list: exactly what the torch module consumes.
    data_list = [(first_all[i], last_all[i], seq_all[i, :lens[i]])
                 for i in range(N_REGIONS)]

    # fc parameters (torch layout: weight (out_features, in_features)).
    kw1, kb1, kw2, kb2, kw3, kb3 = jax.random.split(kp, 6)
    params = (
        jax.random.normal(kw1, (INPUT_DIM, REGION_DIM), jnp.float32) * 0.1,
        jax.random.normal(kb1, (INPUT_DIM,), jnp.float32) * 0.1,
        jax.random.normal(kw2, (HIDDEN2, INPUT_DIM), jnp.float32) * 0.1,
        jax.random.normal(kb2, (HIDDEN2,), jnp.float32) * 0.1,
        jax.random.normal(kw3, (N_CLASSES, HIDDEN2), jnp.float32) * 0.1,
        jax.random.normal(kb3, (N_CLASSES,), jnp.float32) * 0.1,
    )

    # Host-side prep happens once, outside the forward path.
    dense = densify_regions(data_list, tile_n=TILE_N)
    prepared = prepare_params(params)

    out = region_clf_forward(dense, prepared, tile_n=TILE_N)
    out = jax.block_until_ready(out)

    ref = jnp.asarray(region_clf_reference(data_list, params))
    assert out.shape == (N_REGIONS, N_CLASSES), out.shape
    assert jnp.allclose(out, ref, atol=1e-3, rtol=1e-3), \
        float(jnp.max(jnp.abs(out - ref)))

    print("KERNEL_OK")
</pallas_src>

<mosaic_0001>
module attributes {stable_mosaic.version = 11 : i64} {
  func.func @region_clf_kernel(%arg0: i32, %arg1: memref<32x128xbf16, #tpu.memory_space<vmem>>, %arg2: memref<32x128xbf16, #tpu.memory_space<vmem>>, %arg3: memref<9x32x128xbf16, #tpu.memory_space<vmem>>, %arg4: memref<1x128xf32, #tpu.memory_space<vmem>>, %arg5: memref<32x96xf32, #tpu.memory_space<vmem>>, %arg6: memref<32x1xf32, #tpu.memory_space<vmem>>, %arg7: memref<64x32xf32, #tpu.memory_space<vmem>>, %arg8: memref<64x1xf32, #tpu.memory_space<vmem>>, %arg9: memref<4x64xf32, #tpu.memory_space<vmem>>, %arg10: memref<4x1xf32, #tpu.memory_space<vmem>>, %arg11: memref<4x128xf32, #tpu.memory_space<vmem>>) attributes {dimension_semantics = [#tpu.dimension_semantics<parallel>], iteration_bounds = array<i64: 2>, scalar_prefetch = 0 : i64, scratch_operands = 0 : i64, tpu.core_type = #tpu.core_type<tc>, window_params = [{transform_indices = @transform_0, window_bounds = array<i64: 32, 128>}, {transform_indices = @transform_1, window_bounds = array<i64: 32, 128>}, {transform_indices = @transform_2, window_bounds = array<i64: 9, 32, 128>}, {transform_indices = @transform_3, window_bounds = array<i64: 1, 128>}, {pipeline_mode = #tpu.pipeline_mode<synchronous>, transform_indices = @transform_4, window_bounds = array<i64: 32, 96>}, {pipeline_mode = #tpu.pipeline_mode<synchronous>, transform_indices = @transform_5, window_bounds = array<i64: 32, 1>}, {pipeline_mode = #tpu.pipeline_mode<synchronous>, transform_indices = @transform_6, window_bounds = array<i64: 64, 32>}, {pipeline_mode = #tpu.pipeline_mode<synchronous>, transform_indices = @transform_7, window_bounds = array<i64: 64, 1>}, {pipeline_mode = #tpu.pipeline_mode<synchronous>, transform_indices = @transform_8, window_bounds = array<i64: 4, 64>}, {pipeline_mode = #tpu.pipeline_mode<synchronous>, transform_indices = @transform_9, window_bounds = array<i64: 4, 1>}, {transform_indices = @transform_10, window_bounds = array<i64: 4, 128>}]} {
    %c0 = arith.constant 0 : index
    %c0_0 = arith.constant 0 : index
    %c0_1 = arith.constant 0 : index
    %0 = vector.load %arg3[%c0, %c0_0, %c0_1] : memref<9x32x128xbf16, #tpu.memory_space<vmem>>, vector<9x32x128xbf16>
    %1 = arith.extf %0 : vector<9x32x128xbf16> to vector<9x32x128xf32>
    %cst = arith.constant dense<0.000000e+00> : vector<32x128xf32>
    %2 = vector.multi_reduction <add>, %1, %cst [0] : vector<9x32x128xf32> to vector<32x128xf32>
    %c0_2 = arith.constant 0 : index
    %c0_3 = arith.constant 0 : index
    %3 = vector.load %arg4[%c0_2, %c0_3] : memref<1x128xf32, #tpu.memory_space<vmem>>, vector<1x128xf32>
    %4 = vector.broadcast %3 : vector<1x128xf32> to vector<32x128xf32>
    %5 = arith.mulf %2, %4 : vector<32x128xf32>
    %c0_4 = arith.constant 0 : index
    %c0_5 = arith.constant 0 : index
    %6 = vector.load %arg1[%c0_4, %c0_5] : memref<32x128xbf16, #tpu.memory_space<vmem>>, vector<32x128xbf16>
    %7 = arith.extf %6 : vector<32x128xbf16> to vector<32x128xf32>
    %cst_6 = arith.constant 0.000000e+00 : f32
    %8 = vector.broadcast %cst_6 : f32 to vector<32x128xf32>
    %9 = arith.maximumf %7, %8 : vector<32x128xf32>
    %c0_7 = arith.constant 0 : index
    %c0_8 = arith.constant 0 : index
    %10 = vector.load %arg2[%c0_7, %c0_8] : memref<32x128xbf16, #tpu.memory_space<vmem>>, vector<32x128xbf16>
    %11 = arith.extf %10 : vector<32x128xbf16> to vector<32x128xf32>
    %cst_9 = arith.constant 0.000000e+00 : f32
    %12 = vector.broadcast %cst_9 : f32 to vector<32x128xf32>
    %13 = arith.maximumf %11, %12 : vector<32x128xf32>
    %cst_10 = arith.constant 0.000000e+00 : f32
    %14 = vector.broadcast %cst_10 : f32 to vector<32x128xf32>
    %15 = arith.maximumf %5, %14 : vector<32x128xf32>
    %16 = tpu.concatenate %9, %13, %15 in 0 : vector<32x128xf32>, vector<32x128xf32>, vector<32x128xf32> -> vector<96x128xf32>
    %c0_11 = arith.constant 0 : index
    %c0_12 = arith.constant 0 : index
    %17 = vector.load %arg5[%c0_11, %c0_12] : memref<32x96xf32, #tpu.memory_space<vmem>>, vector<32x96xf32>
    %cst_13 = arith.constant dense<0.000000e+00> : vector<32x128xf32>
    %18 = tpu.matmul %17, %16, %cst_13 {dimension_numbers = #tpu.dot_dimension_numbers<[1], [0], [0], [1], [0, 0, 1, 1], [], []>} : vector<32x96xf32>, vector<96x128xf32>, vector<32x128xf32> -> vector<32x128xf32>
    %c0_14 = arith.constant 0 : index
    %c0_15 = arith.constant 0 : index
    %19 = vector.load %arg6[%c0_14, %c0_15] : memref<32x1xf32, #tpu.memory_space<vmem>>, vector<32x1xf32>
    %20 = vector.broadcast %19 : vector<32x1xf32> to vector<32x128xf32>
    %21 = arith.addf %18, %20 : vector<32x128xf32>
    %cst_16 = arith.constant 0.000000e+00 : f32
    %22 = vector.broadcast %cst_16 : f32 to vector<32x128xf32>
    %23 = arith.maximumf %21, %22 : vector<32x128xf32>
    %c0_17 = arith.constant 0 : index
    %c0_18 = arith.constant 0 : index
    %24 = vector.load %arg7[%c0_17, %c0_18] : memref<64x32xf32, #tpu.memory_space<vmem>>, vector<64x32xf32>
    %cst_19 = arith.constant dense<0.000000e+00> : vector<64x128xf32>
    %25 = tpu.matmul %24, %23, %cst_19 {dimension_numbers = #tpu.dot_dimension_numbers<[1], [0], [0], [1], [0, 0, 1, 1], [], []>} : vector<64x32xf32>, vector<32x128xf32>, vector<64x128xf32> -> vector<64x128xf32>
    %c0_20 = arith.constant 0 : index
    %c0_21 = arith.constant 0 : index
    %26 = vector.load %arg8[%c0_20, %c0_21] : memref<64x1xf32, #tpu.memory_space<vmem>>, vector<64x1xf32>
    %27 = vector.broadcast %26 : vector<64x1xf32> to vector<64x128xf32>
    %28 = arith.addf %25, %27 : vector<64x128xf32>
    %cst_22 = arith.constant 0.000000e+00 : f32
    %29 = vector.broadcast %cst_22 : f32 to vector<64x128xf32>
    %30 = arith.maximumf %28, %29 : vector<64x128xf32>
    %c0_23 = arith.constant 0 : index
    %c0_24 = arith.constant 0 : index
    %31 = vector.load %arg9[%c0_23, %c0_24] : memref<4x64xf32, #tpu.memory_space<vmem>>, vector<4x64xf32>
    %cst_25 = arith.constant dense<0.000000e+00> : vector<4x128xf32>
    %32 = tpu.matmul %31, %30, %cst_25 {dimension_numbers = #tpu.dot_dimension_numbers<[1], [0], [0], [1], [0, 0, 1, 1], [], []>} : vector<4x64xf32>, vector<64x128xf32>, vector<4x128xf32> -> vector<4x128xf32>
    %c0_26 = arith.constant 0 : index
    %c0_27 = arith.constant 0 : index
    %33 = vector.load %arg10[%c0_26, %c0_27] : memref<4x1xf32, #tpu.memory_space<vmem>>, vector<4x1xf32>
    %34 = vector.broadcast %33 : vector<4x1xf32> to vector<4x128xf32>
    %35 = arith.addf %32, %34 : vector<4x128xf32>
    %c0_28 = arith.constant 0 : index
    %c0_29 = arith.constant 0 : index
    %36 = vector.load %arg11[%c0_28, %c0_29] : memref<4x128xf32, #tpu.memory_space<vmem>>, vector<4x128xf32>
    tpu.vector_store %arg11[%c0_28, %c0_29], %35 {strides = array<i32>} : memref<4x128xf32, #tpu.memory_space<vmem>>, vector<4x128xf32>,
    return
  }
  func.func @transform_0(%arg0: i32) -> (i32, i32) {
    %c0_i32 = arith.constant 0 : i32
    %c0_i32_0 = arith.constant 0 : i32
    return %c0_i32, %arg0 : i32, i32
  }
  func.func @transform_1(%arg0: i32) -> (i32, i32) {
    %c0_i32 = arith.constant 0 : i32
    %c0_i32_0 = arith.constant 0 : i32
    return %c0_i32, %arg0 : i32, i32
  }
  func.func @transform_2(%arg0: i32) -> (i32, i32, i32) {
    %c0_i32 = arith.constant 0 : i32
    %c0_i32_0 = arith.constant 0 : i32
    %c0_i32_1 = arith.constant 0 : i32
    return %c0_i32, %c0_i32_0, %arg0 : i32, i32, i32
  }
  func.func @transform_3(%arg0: i32) -> (i32, i32) {
    %c0_i32 = arith.constant 0 : i32
    %c0_i32_0 = arith.constant 0 : i32
    return %c0_i32, %arg0 : i32, i32
  }
  func.func @transform_4(%arg0: i32) -> (i32, i32) {
    %c0_i32 = arith.constant 0 : i32
    %c0_i32_0 = arith.constant 0 : i32
    %c0_i32_1 = arith.constant 0 : i32
    return %c0_i32, %c0_i32_0 : i32, i32
  }
  func.func @transform_5(%arg0: i32) -> (i32, i32) {
    %c0_i32 = arith.constant 0 : i32
    %c0_i32_0 = arith.constant 0 : i32
    %c0_i32_1 = arith.constant 0 : i32
    return %c0_i32, %c0_i32_0 : i32, i32
  }
  func.func @transform_6(%arg0: i32) -> (i32, i32) {
    %c0_i32 = arith.constant 0 : i32
    %c0_i32_0 = arith.constant 0 : i32
    %c0_i32_1 = arith.constant 0 : i32
    return %c0_i32, %c0_i32_0 : i32, i32
  }
  func.func @transform_7(%arg0: i32) -> (i32, i32) {
    %c0_i32 = arith.constant 0 : i32
    %c0_i32_0 = arith.constant 0 : i32
    %c0_i32_1 = arith.constant 0 : i32
    return %c0_i32, %c0_i32_0 : i32, i32
  }
  func.func @transform_8(%arg0: i32) -> (i32, i32) {
    %c0_i32 = arith.constant 0 : i32
    %c0_i32_0 = arith.constant 0 : i32
    %c0_i32_1 = arith.constant 0 : i32
    return %c0_i32, %c0_i32_0 : i32, i32
  }
  func.func @transform_9(%arg0: i32) -> (i32, i32) {
    %c0_i32 = arith.constant 0 : i32
    %c0_i32_0 = arith.constant 0 : i32
    %c0_i32_1 = arith.constant 0 : i32
    return %c0_i32, %c0_i32_0 : i32, i32
  }
  func.func @transform_10(%arg0: i32) -> (i32, i32) {
    %c0_i32 = arith.constant 0 : i32
    %c0_i32_0 = arith.constant 0 : i32
    return %c0_i32, %arg0 : i32, i32
  }
}

</mosaic_0001>

<llo_original>
// kernel: tpu_custom_call.1
$region0: #{tpu_custom_call.1}
  #allocation0 [shape = 'u32[]', space=smem, size = 0x4, offset = 0x4, fixed_abs, tag = 'smem constant byte address 0x4 - core index']
  #allocation1 [shape = 'u32[144,128]{1,0:T(1,128)}', space=vmem, size = 0x12000, scoped, tag = 'internal scratch']
  %s0 = inlined_call_operand.vmem [shape: bf16[32,256], index: 0, kind: input, shape index: {}]
  %s1 = inlined_call_operand.vmem [shape: bf16[32,256], index: 1, kind: input, shape index: {}]
  %s2 = inlined_call_operand.hbm [shape: bf16[9,32,256], index: 2, kind: input, shape index: {}]
  %s3 = inlined_call_operand.vmem [shape: f32[1,256], index: 3, kind: input, shape index: {}]
  %s4 = inlined_call_operand.vmem [shape: f32[32,96], index: 4, kind: input, shape index: {}]
  %s5 = inlined_call_operand.vmem [shape: f32[32,1], index: 5, kind: input, shape index: {}]
  %s6 = inlined_call_operand.vmem [shape: f32[64,32], index: 6, kind: input, shape index: {}]
  %s7 = inlined_call_operand.vmem [shape: f32[64,1], index: 7, kind: input, shape index: {}]
  %s8 = inlined_call_operand.vmem [shape: f32[4,64], index: 8, kind: input, shape index: {}]
  %s9 = inlined_call_operand.vmem [shape: f32[4,1], index: 9, kind: input, shape index: {}]
  %s10 = inlined_call_operand.hbm [shape: f32[4,256], index: 10, kind: output, shape index: {}]
  %s11 = sld [smem:[#allocation0]]
  $region159: #{tpu_custom_call.1} parent=0
    _
  %s13 = ssub.s32 1, %s11
  %s14 = scalar_select 0, %s13, %s11
  $region1: #{tpu_custom_call.1} parent=0
    #allocation2 [shape = 'u8[16384]{0}', space=vmem, size = 0x4000, scoped, tag = 'input window, operand 0']
    #allocation3 [shape = 'u8[16384]{0}', space=vmem, size = 0x4000, scoped, tag = 'input window, operand 1']
    #allocation4 [shape = 'u8[147456]{0}', space=vmem, size = 0x24000, scoped, tag = 'input window, operand 2']
    #allocation5 [shape = 's32[2]{0}', space=sflag, size = 0x8, scoped, tag = 'scoped memory for tpu_custom_call.1']
    #allocation6 [shape = 's32[2]{0}', space=sflag, size = 0x8, scoped, tag = 'scoped memory for tpu_custom_call.1']
    #allocation7 [shape = 'u8[4096]{0}', space=vmem, size = 0x1000, scoped, tag = 'output window, operand 0']
    %15 = vsyncpa [#allocation5], 0
    %s16 = scalar_lea.sflag [#allocation5], 1
    %17 = vsyncpa %s16, 0
    %18 = vsyncpa [#allocation6], 0
    %s19 = scalar_lea.sflag [#allocation6], 1
    %20 = vsyncpa %s19, 0
    loop: start=0, step=1, limit=4
    $region2: #{tpu_custom_call.1} parent=1 // loop_pre_header
      _
    $region3: #{tpu_custom_call.1} parent=1 // loop_header
      %s22 = sphi 0, %s26
      %p23 = scmp.ge.s32.totalorder %s22, 4
      %s32 = sphi 0, %s34
      %s35 = sphi 0, %s32
      %s36 = sphi 0, %s35
      %s52 = sphi 0, %s36
      %s58 = sphi 0, %s60
      %s61 = sphi 0, %s58
      %s62 = sphi 0, %s61
      %s78 = sphi 0, %s62
      %s84 = sphi 0, %s86
      %s87 = sphi 0, %s84
      %s88 = sphi 0, %s87
      %s104 = sphi 0, %s88
      %s110 = sphi 0, %s112
      %s113 = sphi 0, %s110
      %s114 = sphi 0, %s113
      %s130 = sphi 0, %s114
      %s134 = sphi 0, %s134
      %s136 = sphi 0, %s134
      %s137 = sphi 0, %s136
      %s151 = sphi 0, %s137
      %s155 = sphi 0, %s155
      %s157 = sphi 0, %s155
      %s158 = sphi 0, %s157
      %s172 = sphi 0, %s158
      %s176 = sphi 0, %s176
      %s178 = sphi 0, %s176
      %s179 = sphi 0, %s178
      %s193 = sphi 0, %s179
      %s197 = sphi 0, %s197
      %s199 = sphi 0, %s197
      %s200 = sphi 0, %s199
      %s214 = sphi 0, %s200
      %s218 = sphi 0, %s218
      %s220 = sphi 0, %s218
      %s221 = sphi 0, %s220
      %s235 = sphi 0, %s221
      %s239 = sphi 0, %s239
      %s241 = sphi 0, %s239
      %s242 = sphi 0, %s241
      %s256 = sphi 0, %s242
      %s262 = sphi 0, %s264
      %s265 = sphi 0, %s262
      %s266 = sphi 0, %s265
      %s282 = sphi 0, %s266
    $region4: #{tpu_custom_call.1} parent=1 // loop_header_branch
      %25 = sbr.rel (%p23) target = $region8
    $region5: #{tpu_custom_call.1} parent=1 // loop_body
      %s27 = ssub.s32 %s22, 1
      %s28 = ssub.s32 %s22, 2
      %s29 = sadd.s32 %s22, 1
      %s30 = ssub.s32 %s22, %s29
      %p31 = scmp.eq.s32.totalorder %s30, 0
      %s33 = sadd.s32 %s32, 1
      %s34 = scalar_select %p31, %s32, %s33
      %p37 = pneg %p31
      %p38 = scmp.eq.s32.totalorder %s22, 1
      %p39 = por %p37, %p38
      %p40 = scmp.ne.s32.totalorder %s32, %s35
      %p41 = scmp.eq.s32.totalorder %s22, 0
      %p42 = por %p40, %p41
      %p43 = scmp.ne.s32.totalorder %s32, %s35
      %p44 = scmp.eq.s32.totalorder %s27, 1
      %p45 = por %p43, %p44
      %p46 = scmp.ne.s32.totalorder %s35, %s36
      %p47 = scmp.eq.s32.totalorder %s27, 0
      %p48 = por %p46, %p47
      %p49 = scmp.ne.s32.totalorder %s35, %s36
      %p50 = scmp.eq.s32.totalorder %s28, 1
      %p51 = por %p49, %p50
      %p53 = scmp.ne.s32.totalorder %s36, %s52
      %p54 = scmp.eq.s32.totalorder %s28, 0
      %p55 = por %p53, %p54
      %s56 = ssub.s32 %s22, %s29
      %p57 = scmp.eq.s32.totalorder %s56, 0
      %s59 = sadd.s32 %s58, 1
      %s60 = scalar_select %p57, %s58, %s59
      %p63 = pneg %p57
      %p64 = scmp.eq.s32.totalorder %s22, 1
      %p65 = por %p63, %p64
      %p66 = scmp.ne.s32.totalorder %s58, %s61
      %p67 = scmp.eq.s32.totalorder %s22, 0
      %p68 = por %p66, %p67
      %p69 = scmp.ne.s32.totalorder %s58, %s61
      %p70 = scmp.eq.s32.totalorder %s27, 1
      %p71 = por %p69, %p70
      %p72 = scmp.ne.s32.totalorder %s61, %s62
      %p73 = scmp.eq.s32.totalorder %s27, 0
      %p74 = por %p72, %p73
      %p75 = scmp.ne.s32.totalorder %s61, %s62
      %p76 = scmp.eq.s32.totalorder %s28, 1
      %p77 = por %p75, %p76
      %p79 = scmp.ne.s32.totalorder %s62, %s78
      %p80 = scmp.eq.s32.totalorder %s28, 0
      %p81 = por %p79, %p80
      %s82 = ssub.s32 %s22, %s29
      %p83 = scmp.eq.s32.totalorder %s82, 0
      %s85 = sadd.s32 %s84, 1
      %s86 = scalar_select %p83, %s84, %s85
      %p89 = pneg %p83
      %p90 = scmp.eq.s32.totalorder %s22, 1
      %p91 = por %p89, %p90
      %p92 = scmp.ne.s32.totalorder %s84, %s87
      %p93 = scmp.eq.s32.totalorder %s22, 0
      %p94 = por %p92, %p93
      %p95 = scmp.ne.s32.totalorder %s84, %s87
      %p96 = scmp.eq.s32.totalorder %s27, 1
      %p97 = por %p95, %p96
      %p98 = scmp.ne.s32.totalorder %s87, %s88
      %p99 = scmp.eq.s32.totalorder %s27, 0
      %p100 = por %p98, %p99
      %p101 = scmp.ne.s32.totalorder %s87, %s88
      %p102 = scmp.eq.s32.totalorder %s28, 1
      %p103 = por %p101, %p102
      %p105 = scmp.ne.s32.totalorder %s88, %s104
      %p106 = scmp.eq.s32.totalorder %s28, 0
      %p107 = por %p105, %p106
      %s108 = ssub.s32 %s22, %s29
      %p109 = scmp.eq.s32.totalorder %s108, 0
      %s111 = sadd.s32 %s110, 1
      %s112 = scalar_select %p109, %s110, %s111
      %p115 = pneg %p109
      %p116 = scmp.eq.s32.totalorder %s22, 1
      %p117 = por %p115, %p116
      %p118 = scmp.ne.s32.totalorder %s110, %s113
      %p119 = scmp.eq.s32.totalorder %s22, 0
      %p120 = por %p118, %p119
      %p121 = scmp.ne.s32.totalorder %s110, %s113
      %p122 = scmp.eq.s32.totalorder %s27, 1
      %p123 = por %p121, %p122
      %p124 = scmp.ne.s32.totalorder %s113, %s114
      %p125 = scmp.eq.s32.totalorder %s27, 0
      %p126 = por %p124, %p125
      %p127 = scmp.ne.s32.totalorder %s113, %s114
      %p128 = scmp.eq.s32.totalorder %s28, 1
      %p129 = por %p127, %p128
      %p131 = scmp.ne.s32.totalorder %s114, %s130
      %p132 = scmp.eq.s32.totalorder %s28, 0
      %p133 = por %p131, %p132
      %s135 = sadd.s32 %s134, 1
      %p138 = scmp.eq.s32.totalorder %s22, 1
      %p139 = scmp.ne.s32.totalorder %s134, %s136
      %p140 = scmp.eq.s32.totalorder %s22, 0
      %p141 = por %p139, %p140
      %p142 = scmp.ne.s32.totalorder %s134, %s136
      %p143 = scmp.eq.s32.totalorder %s27, 1
      %p144 = por %p142, %p143
      %p145 = scmp.ne.s32.totalorder %s136, %s137
      %p146 = scmp.eq.s32.totalorder %s27, 0
      %p147 = por %p145, %p146
      %p148 = scmp.ne.s32.totalorder %s136, %s137
      %p149 = scmp.eq.s32.totalorder %s28, 1
      %p150 = por %p148, %p149
      %p152 = scmp.ne.s32.totalorder %s137, %s151
      %p153 = scmp.eq.s32.totalorder %s28, 0
      %p154 = por %p152, %p153
      %s156 = sadd.s32 %s155, 1
      %p159 = scmp.eq.s32.totalorder %s22, 1
      %p160 = scmp.ne.s32.totalorder %s155, %s157
      %p161 = scmp.eq.s32.totalorder %s22, 0
      %p162 = por %p160, %p161
      %p163 = scmp.ne.s32.totalorder %s155, %s157
      %p164 = scmp.eq.s32.totalorder %s27, 1
      %p165 = por %p163, %p164
      %p166 = scmp.ne.s32.totalorder %s157, %s158
      %p167 = scmp.eq.s32.totalorder %s27, 0
      %p168 = por %p166, %p167
      %p169 = scmp.ne.s32.totalorder %s157, %s158
      %p170 = scmp.eq.s32.totalorder %s28, 1
      %p171 = por %p169, %p170
      %p173 = scmp.ne.s32.totalorder %s158, %s172
      %p174 = scmp.eq.s32.totalorder %s28, 0
      %p175 = por %p173, %p174
      %s177 = sadd.s32 %s176, 1
      %p180 = scmp.eq.s32.totalorder %s22, 1
      %p181 = scmp.ne.s32.totalorder %s176, %s178
      %p182 = scmp.eq.s32.totalorder %s22, 0
      %p183 = por %p181, %p182
      %p184 = scmp.ne.s32.totalorder %s176, %s178
      %p185 = scmp.eq.s32.totalorder %s27, 1
      %p186 = por %p184, %p185
      %p187 = scmp.ne.s32.totalorder %s178, %s179
      %p188 = scmp.eq.s32.totalorder %s27, 0
      %p189 = por %p187, %p188
      %p190 = scmp.ne.s32.totalorder %s178, %s179
      %p191 = scmp.eq.s32.totalorder %s28, 1
      %p192 = por %p190, %p191
      %p194 = scmp.ne.s32.totalorder %s179, %s193
      %p195 = scmp.eq.s32.totalorder %s28, 0
      %p196 = por %p194, %p195
      %s198 = sadd.s32 %s197, 1
      %p201 = scmp.eq.s32.totalorder %s22, 1
      %p202 = scmp.ne.s32.totalorder %s197, %s199
      %p203 = scmp.eq.s32.totalorder %s22, 0
      %p204 = por %p202, %p203
      %p205 = scmp.ne.s32.totalorder %s197, %s199
      %p206 = scmp.eq.s32.totalorder %s27, 1
      %p207 = por %p205, %p206
      %p208 = scmp.ne.s32.totalorder %s199, %s200
      %p209 = scmp.eq.s32.totalorder %s27, 0
      %p210 = por %p208, %p209
      %p211 = scmp.ne.s32.totalorder %s199, %s200
      %p212 = scmp.eq.s32.totalorder %s28, 1
      %p213 = por %p211, %p212
      %p215 = scmp.ne.s32.totalorder %s200, %s214
      %p216 = scmp.eq.s32.totalorder %s28, 0
      %p217 = por %p215, %p216
      %s219 = sadd.s32 %s218, 1
      %p222 = scmp.eq.s32.totalorder %s22, 1
      %p223 = scmp.ne.s32.totalorder %s218, %s220
      %p224 = scmp.eq.s32.totalorder %s22, 0
      %p225 = por %p223, %p224
      %p226 = scmp.ne.s32.totalorder %s218, %s220
      %p227 = scmp.eq.s32.totalorder %s27, 1
      %p228 = por %p226, %p227
      %p229 = scmp.ne.s32.totalorder %s220, %s221
      %p230 = scmp.eq.s32.totalorder %s27, 0
      %p231 = por %p229, %p230
      %p232 = scmp.ne.s32.totalorder %s220, %s221
      %p233 = scmp.eq.s32.totalorder %s28, 1
      %p234 = por %p232, %p233
      %p236 = scmp.ne.s32.totalorder %s221, %s235
      %p237 = scmp.eq.s32.totalorder %s28, 0
      %p238 = por %p236, %p237
      %s240 = sadd.s32 %s239, 1
      %p243 = scmp.eq.s32.totalorder %s22, 1
      %p244 = scmp.ne.s32.totalorder %s239, %s241
      %p245 = scmp.eq.s32.totalorder %s22, 0
      %p246 = por %p244, %p245
      %p247 = scmp.ne.s32.totalorder %s239, %s241
      %p248 = scmp.eq.s32.totalorder %s27, 1
      %p249 = por %p247, %p248
      %p250 = scmp.ne.s32.totalorder %s241, %s242
      %p251 = scmp.eq.s32.totalorder %s27, 0
      %p252 = por %p250, %p251
      %p253 = scmp.ne.s32.totalorder %s241, %s242
      %p254 = scmp.eq.s32.totalorder %s28, 1
      %p255 = por %p253, %p254
      %p257 = scmp.ne.s32.totalorder %s242, %s256
      %p258 = scmp.eq.s32.totalorder %s28, 0
      %p259 = por %p257, %p258
      %s260 = ssub.s32 %s22, %s29
      %p261 = scmp.eq.s32.totalorder %s260, 0
      %s263 = sadd.s32 %s262, 1
      %s264 = scalar_select %p261, %s262, %s263
      %p267 = pneg %p261
      %p268 = scmp.eq.s32.totalorder %s22, 1
      %p269 = por %p267, %p268
      %p270 = scmp.ne.s32.totalorder %s262, %s265
      %p271 = scmp.eq.s32.totalorder %s22, 0
      %p272 = por %p270, %p271
      %p273 = scmp.ne.s32.totalorder %s262, %s265
      %p274 = scmp.eq.s32.totalorder %s27, 1
      %p275 = por %p273, %p274
      %p276 = scmp.ne.s32.totalorder %s265, %s266
      %p277 = scmp.eq.s32.totalorder %s27, 0
      %p278 = por %p276, %p277
      %p279 = scmp.ne.s32.totalorder %s265, %s266
      %p280 = scmp.eq.s32.totalorder %s28, 1
      %p281 = por %p279, %p280
      %p283 = scmp.ne.s32.totalorder %s266, %s282
      %p284 = scmp.eq.s32.totalorder %s28, 0
      %p285 = por %p283, %p284
      %p286 = scmp.le.s32.totalorder 1, %s22
      %p287 = scmp.lt.s32.totalorder %s22, 3
      %p288 = pnand %p286, %p287
      %p289 = pneg %p288
      // Predicated region
      $region9: #{tpu_custom_call.1} parent=5 // pred_check
        _
      $region10: #{tpu_custom_call.1} parent=5 // pred_check_branch
        %291 = sbr.rel (%p288) target = $region12
      $region11: #{tpu_custom_call.1} parent=5 // pred_region
        %s292 = ssub.s32 %s22, 1
        // Predicated region
        $region13: #{tpu_custom_call.1} parent=11 // pred_check
          %p293 = pneg %p147
        $region14: #{tpu_custom_call.1} parent=11 // pred_check_branch
          %295 = sbr.rel (%p293) target = $region16
        $region15: #{tpu_custom_call.1} parent=11 // pred_region
          _
        $region16: #{tpu_custom_call.1} parent=11 // pred_fallthru
          _
        // Predicated region
        $region17: #{tpu_custom_call.1} parent=11 // pred_check
          %p296 = pneg %p168
        $region18: #{tpu_custom_call.1} parent=11 // pred_check_branch
          %298 = sbr.rel (%p296) target = $region20
        $region19: #{tpu_custom_call.1} parent=11 // pred_region
          _
        $region20: #{tpu_custom_call.1} parent=11 // pred_fallthru
          _
        // Predicated region
        $region21: #{tpu_custom_call.1} parent=11 // pred_check
          %p299 = pneg %p189
        $region22: #{tpu_custom_call.1} parent=11 // pred_check_branch
          %301 = sbr.rel (%p299) target = $region24
        $region23: #{tpu_custom_call.1} parent=11 // pred_region
          _
        $region24: #{tpu_custom_call.1} parent=11 // pred_fallthru
          _
        // Predicated region
        $region25: #{tpu_custom_call.1} parent=11 // pred_check
          %p302 = pneg %p210
        $region26: #{tpu_custom_call.1} parent=11 // pred_check_branch
          %304 = sbr.rel (%p302) target = $region28
        $region27: #{tpu_custom_call.1} parent=11 // pred_region
          _
        $region28: #{tpu_custom_call.1} parent=11 // pred_fallthru
          _
        // Predicated region
        $region29: #{tpu_custom_call.1} parent=11 // pred_check
          %p305 = pneg %p231
        $region30: #{tpu_custom_call.1} parent=11 // pred_check_branch
          %307 = sbr.rel (%p305) target = $region32
        $region31: #{tpu_custom_call.1} parent=11 // pred_region
          _
        $region32: #{tpu_custom_call.1} parent=11 // pred_fallthru
          _
        // Predicated region
        $region33: #{tpu_custom_call.1} parent=11 // pred_check
          %p308 = pneg %p252
        $region34: #{tpu_custom_call.1} parent=11 // pred_check_branch
          %310 = sbr.rel (%p308) target = $region36
        $region35: #{tpu_custom_call.1} parent=11 // pred_region
          _
        $region36: #{tpu_custom_call.1} parent=11 // pred_fallthru
          _
      $region12: #{tpu_custom_call.1} parent=5 // pred_fallthru
        _
      %p311 = scmp.lt.s32.totalorder %s22, 2
      // Predicated region
      $region37: #{tpu_custom_call.1} parent=5 // pred_check
        %p312 = pneg %p311
      $region38: #{tpu_custom_call.1} parent=5 // pred_check_branch
        %314 = sbr.rel (%p312) target = $region40
      $region39: #{tpu_custom_call.1} parent=5 // pred_region
        // Predicated region
        $region41: #{tpu_custom_call.1} parent=39 // pred_check
          %p315 = pneg %p42
        $region42: #{tpu_custom_call.1} parent=39 // pred_check_branch
          %317 = sbr.rel (%p315) target = $region44
        $region43: #{tpu_custom_call.1} parent=39 // pred_region
          %s318 = sand.u32 %s32, 1
          %s319 = sand.u32 %s32, 1
          %s320 = smul.addr %s319, 16
          %s321 = scalar_lea.vmem [#allocation2], %s320
          %s322 = smul.addr %s22, 4
          %s323 = scalar_lea.vmem %s0, %s322
          // Predicated region
          $region45: #{tpu_custom_call.1} parent=43 // pred_check
            _
          $region46: #{tpu_custom_call.1} parent=43 // pred_check_branch
            %325 = sbr.rel (0) target = $region48
          $region47: #{tpu_custom_call.1} parent=43 // pred_region
            // Predicated region
            $region49: #{tpu_custom_call.1} parent=47 // pred_check
              _
            $region50: #{tpu_custom_call.1} parent=47 // pred_check_branch
              %327 = sbr.rel target = $region52
            $region51: #{tpu_custom_call.1} parent=47 // pred_region
              // Predicated region
              $region64: #{tpu_custom_call.1} parent=51 // pred_check
                _
              $region65: #{tpu_custom_call.1} parent=51 // pred_check_branch
                %348 = sbr.rel (0) target = $region67
              $region66: #{tpu_custom_call.1} parent=51 // pred_region
                loop: start=0, step=1, limit=1
                $region68: #{tpu_custom_call.1} parent=66 // loop_pre_header
                  _
                $region69: #{tpu_custom_call.1} parent=66 // loop_header
                  %s350 = sphi 0, %s354
                  %p351 = scmp.ge.s32.totalorder %s350, 1
                  %s355 = sphi %s323, %s323
                  %s356 = sphi %s321, %s321
                $region70: #{tpu_custom_call.1} parent=66 // loop_header_branch
                  %353 = sbr.rel (%p351) target = $region74
                $region71: #{tpu_custom_call.1} parent=66 // loop_body
                  _
                $region72: #{tpu_custom_call.1} parent=66 // loop_footer
                  %s354 = sadd.s32 1, %s350
                $region73: #{tpu_custom_call.1} parent=66 // loop_footer_branch
                  %349 = sbr.rel target = $region69
                $region74: #{tpu_custom_call.1} parent=66 // loop_exit
                  _
                loop: start=0, step=1, limit=1
                $region75: #{tpu_custom_call.1} parent=66 // loop_pre_header
                  _
                $region76: #{tpu_custom_call.1} parent=66 // loop_header
                  %s359 = sphi 0, %s363
                  %p360 = scmp.ge.s32.totalorder %s359, 1
                  %s364 = sphi %s323, %s323
                  %s365 = sphi %s321, %s321
                $region77: #{tpu_custom_call.1} parent=66 // loop_header_branch
                  %362 = sbr.rel (%p360) target = $region81
                $region78: #{tpu_custom_call.1} parent=66 // loop_body
                  %v366 = vld [vmem:[%s364] sm:$0xf]
                  %367 = vst [vmem:[%s365] sm:$0xf] %v366
                  %v368 = vld [vmem:[%s364 + $0x8] sm:$0xf]
                  %369 = vst [vmem:[%s365 + $0x4] sm:$0xf] %v368
                  %v370 = vld [vmem:[%s364 + $0x10] sm:$0xf]
                  %371 = vst [vmem:[%s365 + $0x8] sm:$0xf] %v370
                  %v372 = vld [vmem:[%s364 + $0x18] sm:$0xf]
                  %373 = vst [vmem:[%s365 + $0xc] sm:$0xf] %v372
                $region79: #{tpu_custom_call.1} parent=66 // loop_footer
                  %s363 = sadd.s32 1, %s359
                $region80: #{tpu_custom_call.1} parent=66 // loop_footer_branch
                  %358 = sbr.rel target = $region76
                $region81: #{tpu_custom_call.1} parent=66 // loop_exit
                  _
              $region67: #{tpu_custom_call.1} parent=51 // pred_fallthru
                _
            $region52: #{tpu_custom_call.1} parent=47 // pred_fallthru
              _
            // Predicated region
            $region53: #{tpu_custom_call.1} parent=47 // pred_check
              _
            $region54: #{tpu_custom_call.1} parent=47 // pred_check_branch
              %329 = sbr.rel (0) target = $region56
            $region55: #{tpu_custom_call.1} parent=47 // pred_region
              loop: start=0, step=1, limit=1
              $region57: #{tpu_custom_call.1} parent=55 // loop_pre_header
                _
              $region58: #{tpu_custom_call.1} parent=55 // loop_header
                %s332 = sphi 0, %s336
                %p333 = scmp.ge.s32.totalorder %s332, 1
                %s337 = sphi %s323, %s323
                %s338 = sphi %s321, %s321
              $region59: #{tpu_custom_call.1} parent=55 // loop_header_branch
                %335 = sbr.rel (%p333) target = $region63
              $region60: #{tpu_custom_call.1} parent=55 // loop_body
                %v339 = vld [vmem:[%s337] sm:$0xf]
                %340 = vst [vmem:[%s338] sm:$0xf] %v339
                %v341 = vld [vmem:[%s337 + $0x8] sm:$0xf]
                %342 = vst [vmem:[%s338 + $0x4] sm:$0xf] %v341
                %v343 = vld [vmem:[%s337 + $0x10] sm:$0xf]
                %344 = vst [vmem:[%s338 + $0x8] sm:$0xf] %v343
                %v345 = vld [vmem:[%s337 + $0x18] sm:$0xf]
                %346 = vst [vmem:[%s338 + $0xc] sm:$0xf] %v345
              $region61: #{tpu_custom_call.1} parent=55 // loop_footer
                %s336 = sadd.s32 1, %s332
              $region62: #{tpu_custom_call.1} parent=55 // loop_footer_branch
                %331 = sbr.rel target = $region58
              $region63: #{tpu_custom_call.1} parent=55 // loop_exit
                _
            $region56: #{tpu_custom_call.1} parent=47 // pred_fallthru
              _
          $region48: #{tpu_custom_call.1} parent=43 // pred_fallthru
            _
          %374 = vnop
        $region44: #{tpu_custom_call.1} parent=39 // pred_fallthru
          _
        // Predicated region
        $region82: #{tpu_custom_call.1} parent=39 // pred_check
          %p375 = pneg %p68
        $region83: #{tpu_custom_call.1} parent=39 // pred_check_branch
          %377 = sbr.rel (%p375) target = $region85
        $region84: #{tpu_custom_call.1} parent=39 // pred_region
          %s378 = sand.u32 %s58, 1
          %s379 = sand.u32 %s58, 1
          %s380 = smul.addr %s379, 16
          %s381 = scalar_lea.vmem [#allocation3], %s380
          %s382 = smul.addr %s22, 4
          %s383 = scalar_lea.vmem %s1, %s382
          // Predicated region
          $region86: #{tpu_custom_call.1} parent=84 // pred_check
            _
          $region87: #{tpu_custom_call.1} parent=84 // pred_check_branch
            %385 = sbr.rel (0) target = $region89
          $region88: #{tpu_custom_call.1} parent=84 // pred_region
            // Predicated region
            $region90: #{tpu_custom_call.1} parent=88 // pred_check
              _
            $region91: #{tpu_custom_call.1} parent=88 // pred_check_branch
              %387 = sbr.rel target = $region93
            $region92: #{tpu_custom_call.1} parent=88 // pred_region
              // Predicated region
              $region105: #{tpu_custom_call.1} parent=92 // pred_check
                _
              $region106: #{tpu_custom_call.1} parent=92 // pred_check_branch
                %408 = sbr.rel (0) target = $region108
              $region107: #{tpu_custom_call.1} parent=92 // pred_region
                loop: start=0, step=1, limit=1
                $region109: #{tpu_custom_call.1} parent=107 // loop_pre_header
                  _
                $region110: #{tpu_custom_call.1} parent=107 // loop_header
                  %s410 = sphi 0, %s414
                  %p411 = scmp.ge.s32.totalorder %s410, 1
                  %s415 = sphi %s383, %s383
                  %s416 = sphi %s381, %s381
                $region111: #{tpu_custom_call.1} parent=107 // loop_header_branch
                  %413 = sbr.rel (%p411) target = $region115
                $region112: #{tpu_custom_call.1} parent=107 // loop_body
                  _
                $region113: #{tpu_custom_call.1} parent=107 // loop_footer
                  %s414 = sadd.s32 1, %s410
                $region114: #{tpu_custom_call.1} parent=107 // loop_footer_branch
                  %409 = sbr.rel target = $region110
                $region115: #{tpu_custom_call.1} parent=107 // loop_exit
                  _
                loop: start=0, step=1, limit=1
                $region116: #{tpu_custom_call.1} parent=107 // loop_pre_header
                  _
                $region117: #{tpu_custom_call.1} parent=107 // loop_header
                  %s419 = sphi 0, %s423
                  %p420 = scmp.ge.s32.totalorder %s419, 1
                  %s424 = sphi %s383, %s383
                  %s425 = sphi %s381, %s381
                $region118: #{tpu_custom_call.1} parent=107 // loop_header_branch
                  %422 = sbr.rel (%p420) target = $region122
                $region119: #{tpu_custom_call.1} parent=107 // loop_body
                  %v426 = vld [vmem:[%s424] sm:$0xf]
                  %427 = vst [vmem:[%s425] sm:$0xf] %v426
                  %v428 = vld [vmem:[%s424 + $0x8] sm:$0xf]
                  %429 = vst [vmem:[%s425 + $0x4] sm:$0xf] %v428
                  %v430 = vld [vmem:[%s424 + $0x10] sm:$0xf]
                  %431 = vst [vmem:[%s425 + $0x8] sm:$0xf] %v430
                  %v432 = vld [vmem:[%s424 + $0x18] sm:$0xf]
                  %433 = vst [vmem:[%s425 + $0xc] sm:$0xf] %v432
                $region120: #{tpu_custom_call.1} parent=107 // loop_footer
                  %s423 = sadd.s32 1, %s419
                $region121: #{tpu_custom_call.1} parent=107 // loop_footer_branch
                  %418 = sbr.rel target = $region117
                $region122: #{tpu_custom_call.1} parent=107 // loop_exit
                  _
              $region108: #{tpu_custom_call.1} parent=92 // pred_fallthru
                _
            $region93: #{tpu_custom_call.1} parent=88 // pred_fallthru
              _
            // Predicated region
            $region94: #{tpu_custom_call.1} parent=88 // pred_check
              _
            $region95: #{tpu_custom_call.1} parent=88 // pred_check_branch
              %389 = sbr.rel (0) target = $region97
            $region96: #{tpu_custom_call.1} parent=88 // pred_region
              loop: start=0, step=1, limit=1
              $region98: #{tpu_custom_call.1} parent=96 // loop_pre_header
                _
              $region99: #{tpu_custom_call.1} parent=96 // loop_header
                %s392 = sphi 0, %s396
                %p393 = scmp.ge.s32.totalorder %s392, 1
                %s397 = sphi %s383, %s383
                %s398 = sphi %s381, %s381
              $region100: #{tpu_custom_call.1} parent=96 // loop_header_branch
                %395 = sbr.rel (%p393) target = $region104
              $region101: #{tpu_custom_call.1} parent=96 // loop_body
                %v399 = vld [vmem:[%s397] sm:$0xf]
                %400 = vst [vmem:[%s398] sm:$0xf] %v399
                %v401 = vld [vmem:[%s397 + $0x8] sm:$0xf]
                %402 = vst [vmem:[%s398 + $0x4] sm:$0xf] %v401
                %v403 = vld [vmem:[%s397 + $0x10] sm:$0xf]
                %404 = vst [vmem:[%s398 + $0x8] sm:$0xf] %v403
                %v405 = vld [vmem:[%s397 + $0x18] sm:$0xf]
                %406 = vst [vmem:[%s398 + $0xc] sm:$0xf] %v405
              $region102: #{tpu_custom_call.1} parent=96 // loop_footer
                %s396 = sadd.s32 1, %s392
              $region103: #{tpu_custom_call.1} parent=96 // loop_footer_branch
                %391 = sbr.rel target = $region99
              $region104: #{tpu_custom_call.1} parent=96 // loop_exit
                _
            $region97: #{tpu_custom_call.1} parent=88 // pred_fallthru
              _
          $region89: #{tpu_custom_call.1} parent=84 // pred_fallthru
            _
          %434 = vnop
        $region85: #{tpu_custom_call.1} parent=39 // pred_fallthru
          _
        // Predicated region
        $region123: #{tpu_custom_call.1} parent=39 // pred_check
          %p435 = pneg %p94
        $region124: #{tpu_custom_call.1} parent=39 // pred_check_branch
          %437 = sbr.rel (%p435) target = $region126
        $region125: #{tpu_custom_call.1} parent=39 // pred_region
          %s438 = sand.u32 %s84, 1
          %s439 = scalar_lea.sflag [#allocation5], %s438
          %s440 = sand.u32 %s84, 1
          %s441 = smul.addr %s440, 144
          %s442 = scalar_lea.vmem [#allocation4], %s441
          %s444 = ssub.s32 2304, 2304
          %445 = vsyncadd %s439, %s444
          %s446 = smul.addr %s22, 64
          %s447 = scalar_lea.hbm %s2, %s446
          %s448 = sshll.u32 %s442, 4
          %s449 = int_to_ptr.vmem [resolvable:$true] %s448
          %454 = dma.hbm_to_vmem [thread:$0]  %s447, 2304, %s449, %s439, 128, 64, 4
        $region126: #{tpu_custom_call.1} parent=39 // pred_fallthru
          _
        // Predicated region
        $region127: #{tpu_custom_call.1} parent=39 // pred_check
          %p455 = pneg %p120
        $region128: #{tpu_custom_call.1} parent=39 // pred_check_branch
          %457 = sbr.rel (%p455) target = $region130
        $region129: #{tpu_custom_call.1} parent=39 // pred_region
          %p458 = scmp.lt.s32.totalorder %s22, 1
          %s459 = scalar_select %p458, %s22, 1
          %s460 = scalar_lea.vmem %s3, %s459
        $region130: #{tpu_custom_call.1} parent=39 // pred_fallthru
          _
      $region40: #{tpu_custom_call.1} parent=5 // pred_fallthru
        _
      %p461 = scmp.le.s32.totalorder 1, %s22
      %p462 = scmp.lt.s32.totalorder %s22, 3
      %p463 = pnand %p461, %p462
      %p464 = pneg %p463
      // Predicated region
      $region131: #{tpu_custom_call.1} parent=5 // pred_check
        _
      $region132: #{tpu_custom_call.1} parent=5 // pred_check_branch
        %466 = sbr.rel (%p463) target = $region134
      $region133: #{tpu_custom_call.1} parent=5 // pred_region
        %s467 = ssub.s32 %s22, 1
        %s468 = sand.u32 %s35, 1
        %s469 = sand.u32 %s35, 1
        %s470 = smul.addr %s469, 16
        %s471 = scalar_lea.vmem [#allocation2], %s470
        // Predicated region
        $region135: #{tpu_custom_call.1} parent=133 // pred_check
          %p472 = pneg %p48
        $region136: #{tpu_custom_call.1} parent=133 // pred_check_branch
          %474 = sbr.rel (%p472) target = $region138
        $region137: #{tpu_custom_call.1} parent=133 // pred_region
          _
        $region138: #{tpu_custom_call.1} parent=133 // pred_fallthru
          _
        %s475 = sand.u32 %s61, 1
        %s476 = sand.u32 %s61, 1
        %s477 = smul.addr %s476, 16
        %s478 = scalar_lea.vmem [#allocation3], %s477
        // Predicated region
        $region139: #{tpu_custom_call.1} parent=133 // pred_check
          %p479 = pneg %p74
        $region140: #{tpu_custom_call.1} parent=133 // pred_check_branch
          %481 = sbr.rel (%p479) target = $region142
        $region141: #{tpu_custom_call.1} parent=133 // pred_region
          _
        $region142: #{tpu_custom_call.1} parent=133 // pred_fallthru
          _
        %s482 = sand.u32 %s87, 1
        %s483 = scalar_lea.sflag [#allocation5], %s482
        %s484 = sand.u32 %s87, 1
        %s485 = smul.addr %s484, 144
        %s486 = scalar_lea.vmem [#allocation4], %s485
        // Predicated region
        $region143: #{tpu_custom_call.1} parent=133 // pred_check
          %p487 = pneg %p100
        $region144: #{tpu_custom_call.1} parent=133 // pred_check_branch
          %489 = sbr.rel (%p487) target = $region146
        $region145: #{tpu_custom_call.1} parent=133 // pred_region
          %490 = dma.done %s483, 2304
        $region146: #{tpu_custom_call.1} parent=133 // pred_fallthru
          _
        %s491 = sand.u32 %s35, 1
        %s492 = sand.u32 %s35, 1
        %s493 = smul.addr %s492, 16
        %s494 = scalar_lea.vmem [#allocation2], %s493
        %p495 = pneg %p48
        %p496 = pneg %p45
        %s497 = sand.u32 %s61, 1
        %s498 = sand.u32 %s61, 1
        %s499 = smul.addr %s498, 16
        %s500 = scalar_lea.vmem [#allocation3], %s499
        %p501 = pneg %p74
        %p502 = pneg %p71
        %s503 = sand.u32 %s87, 1
        %s504 = scalar_lea.sflag [#allocation5], %s503
        %s505 = sand.u32 %s87, 1
        %s506 = smul.addr %s505, 144
        %s507 = scalar_lea.vmem [#allocation4], %s506
        %p508 = pneg %p100
        %p509 = pneg %p97
        %p510 = scmp.lt.s32.totalorder %s27, 1
        %s511 = scalar_select %p510, %s27, 1
        %s512 = scalar_lea.vmem %s3, %s511
        %p513 = pneg %p126
        %p514 = pneg %p123
        %p515 = pneg %p147
        %p516 = pneg %p144
        %p517 = pneg %p168
        %p518 = pneg %p165
        %p519 = pneg %p189
        %p520 = pneg %p186
        %p521 = pneg %p210
        %p522 = pneg %p207
        %p523 = pneg %p231
        %p524 = pneg %p228
        %p525 = pneg %p252
        %p526 = pneg %p249
        %p527 = pneg %p278
        %p528 = pneg %p275
        %s529 = sand.u32 %s265, 1
        %s530 = scalar_lea.sflag [#allocation6], %s529
        %s531 = sand.u32 %s265, 1
        %s532 = smul.addr %s531, 4
        %s533 = scalar_lea.vmem [#allocation7], %s532
        %p534 = scmp.lt.s32.totalorder %s27, 1
        %s535 = scalar_select %p534, %s27, 1
        %s536 = scalar_lea.vmem %s3, %s535
        %v537 = vld [vmem:[%s486] sm:$0xf]
        %v538 = vld [vmem:[%s486 + $0x4] sm:$0xf]
        %v539 = vld [vmem:[%s486 + $0x8] sm:$0xf]
        %v540 = vld [vmem:[%s486 + $0xc] sm:$0xf]
        %v541 = vld [vmem:[%s486 + $0x10] sm:$0xf]
        %v542 = vld [vmem:[%s486 + $0x14] sm:$0xf]
        %v543 = vld [vmem:[%s486 + $0x18] sm:$0xf]
        %v544 = vld [vmem:[%s486 + $0x1c] sm:$0xf]
        %v545 = vld [vmem:[%s486 + $0x20] sm:$0xf]
        %v546 = vld [vmem:[%s486 + $0x24] sm:$0xf]
        %v547 = vld [vmem:[%s486 + $0x28] sm:$0xf]
        %v548 = vld [vmem:[%s486 + $0x2c] sm:$0xf]
        %v549 = vld [vmem:[%s486 + $0x30] sm:$0xf]
        %v550 = vld [vmem:[%s486 + $0x34] sm:$0xf]
        %v551 = vld [vmem:[%s486 + $0x38] sm:$0xf]
        %v552 = vld [vmem:[%s486 + $0x3c] sm:$0xf]
        %v553 = vld [vmem:[%s486 + $0x40] sm:$0xf]
        %v554 = vld [vmem:[%s486 + $0x44] sm:$0xf]
        %v555 = vld [vmem:[%s486 + $0x48] sm:$0xf]
        %v556 = vld [vmem:[%s486 + $0x4c] sm:$0xf]
        %v557 = vld [vmem:[%s486 + $0x50] sm:$0xf]
        %v558 = vld [vmem:[%s486 + $0x54] sm:$0xf]
        %v559 = vld [vmem:[%s486 + $0x58] sm:$0xf]
        %v560 = vld [vmem:[%s486 + $0x5c] sm:$0xf]
        %v561 = vld [vmem:[%s486 + $0x60] sm:$0xf]
        %v562 = vld [vmem:[%s486 + $0x64] sm:$0xf]
        %v563 = vld [vmem:[%s486 + $0x68] sm:$0xf]
        %v564 = vld [vmem:[%s486 + $0x6c] sm:$0xf]
        %v565 = vld [vmem:[%s486 + $0x70] sm:$0xf]
        %v566 = vld [vmem:[%s486 + $0x74] sm:$0xf]
        %v567 = vld [vmem:[%s486 + $0x78] sm:$0xf]
        %v568 = vld [vmem:[%s486 + $0x7c] sm:$0xf]
        %v569 = vld [vmem:[%s486 + $0x80] sm:$0xf]
        %v570 = vld [vmem:[%s486 + $0x84] sm:$0xf]
        %v571 = vld [vmem:[%s486 + $0x88] sm:$0xf]
        %v572 = vld [vmem:[%s486 + $0x8c] sm:$0xf]
        %v573 = vunpack.c.l.bf16 %v537
        %v574 = vunpack.c.l.bf16 %v538
        %v575 = vunpack.c.l.bf16 %v539
        %v576 = vunpack.c.l.bf16 %v540
        %v577 = vunpack.c.l.bf16 %v541
        %v578 = vunpack.c.l.bf16 %v542
        %v579 = vunpack.c.l.bf16 %v543
        %v580 = vunpack.c.l.bf16 %v544
        %v581 = vunpack.c.l.bf16 %v545
        %v582 = vunpack.c.l.bf16 %v546
        %v583 = vunpack.c.l.bf16 %v547
        %v584 = vunpack.c.l.bf16 %v548
        %v585 = vunpack.c.l.bf16 %v549
        %v586 = vunpack.c.l.bf16 %v550
        %v587 = vunpack.c.l.bf16 %v551
        %v588 = vunpack.c.l.bf16 %v552
        %v589 = vunpack.c.l.bf16 %v553
        %v590 = vunpack.c.l.bf16 %v554
        %v591 = vunpack.c.l.bf16 %v555
        %v592 = vunpack.c.l.bf16 %v556
        %v593 = vunpack.c.l.bf16 %v557
        %v594 = vunpack.c.l.bf16 %v558
        %v595 = vunpack.c.l.bf16 %v559
        %v596 = vunpack.c.l.bf16 %v560
        %v597 = vunpack.c.l.bf16 %v561
        %v598 = vunpack.c.l.bf16 %v562
        %v599 = vunpack.c.l.bf16 %v563
        %v600 = vunpack.c.l.bf16 %v564
        %v601 = vunpack.c.l.bf16 %v565
        %v602 = vunpack.c.l.bf16 %v566
        %v603 = vunpack.c.l.bf16 %v567
        %v604 = vunpack.c.l.bf16 %v568
        %v605 = vunpack.c.l.bf16 %v569
        %v606 = vunpack.c.l.bf16 %v570
        %v607 = vunpack.c.l.bf16 %v571
        %v608 = vunpack.c.l.bf16 %v572
        %v609 = vadd.f32 %v573, %v577
        %v610 = vadd.f32 %v609, %v581
        %v611 = vadd.f32 %v610, %v585
        %v612 = vadd.f32 %v611, %v589
        %v613 = vadd.f32 %v612, %v593
        %v614 = vadd.f32 %v613, %v597
        %v615 = vadd.f32 %v614, %v601
        %v616 = vadd.f32 %v615, %v605
        %v617 = vadd.f32 %v574, %v578
        %v618 = vadd.f32 %v617, %v582
        %v619 = vadd.f32 %v618, %v586
        %v620 = vadd.f32 %v619, %v590
        %v621 = vadd.f32 %v620, %v594
        %v622 = vadd.f32 %v621, %v598
        %v623 = vadd.f32 %v622, %v602
        %v624 = vadd.f32 %v623, %v606
        %v625 = vadd.f32 %v575, %v579
        %v626 = vadd.f32 %v625, %v583
        %v627 = vadd.f32 %v626, %v587
        %v628 = vadd.f32 %v627, %v591
        %v629 = vadd.f32 %v628, %v595
        %v630 = vadd.f32 %v629, %v599
        %v631 = vadd.f32 %v630, %v603
        %v632 = vadd.f32 %v631, %v607
        %v633 = vadd.f32 %v576, %v580
        %v634 = vadd.f32 %v633, %v584
        %v635 = vadd.f32 %v634, %v588
        %v636 = vadd.f32 %v635, %v592
        %v637 = vadd.f32 %v636, %v596
        %v638 = vadd.f32 %v637, %v600
        %v639 = vadd.f32 %v638, %v604
        %v640 = vadd.f32 %v639, %v608
        %v641 = vld [vmem:[%s536] sm:$0x1]
        %v643 = vlaneseq
        %v644 = vshrl.u32 %v643, 7
        %v645 = vsub.s32 0, %v644
        %v646 = vrot.slane %v641, %v645
        %v648 = vmul.f32 %v616, %v646
        %v649 = vmul.f32 %v624, %v646
        %v650 = vmul.f32 %v632, %v646
        %v651 = vmul.f32 %v640, %v646
        %v652 = vld [vmem:[%s471] sm:$0xf]
        %v653 = vld [vmem:[%s471 + $0x4] sm:$0xf]
        %v654 = vld [vmem:[%s471 + $0x8] sm:$0xf]
        %v655 = vld [vmem:[%s471 + $0xc] sm:$0xf]
        %v656 = vunpack.c.l.bf16 %v652
        %v657 = vunpack.c.l.bf16 %v653
        %v658 = vunpack.c.l.bf16 %v654
        %v659 = vunpack.c.l.bf16 %v655
        %v660 = vmax.f32 %v656, 0.0
        %v661 = vmax.f32 %v657, 0.0
        %v662 = vmax.f32 %v658, 0.0
        %v663 = vmax.f32 %v659, 0.0
        %v664 = vld [vmem:[%s478] sm:$0xf]
        %v665 = vld [vmem:[%s478 + $0x4] sm:$0xf]
        %v666 = vld [vmem:[%s478 + $0x8] sm:$0xf]
        %v667 = vld [vmem:[%s478 + $0xc] sm:$0xf]
        %v668 = vunpack.c.l.bf16 %v664
        %v669 = vunpack.c.l.bf16 %v665
        %v670 = vunpack.c.l.bf16 %v666
        %v671 = vunpack.c.l.bf16 %v667
        %v672 = vmax.f32 %v668, 0.0
        %v673 = vmax.f32 %v669, 0.0
        %v674 = vmax.f32 %v670, 0.0
        %v675 = vmax.f32 %v671, 0.0
        %v676 = vmax.f32 %v648, 0.0
        %v677 = vmax.f32 %v649, 0.0
        %v678 = vmax.f32 %v650, 0.0
        %v679 = vmax.f32 %v651, 0.0
        %v680 = vld [vmem:[%s4] sm:$0xff]
        %v681 = vld [vmem:[%s4 + $0x8] sm:$0xff]
        %v682 = vld [vmem:[%s4 + $0x10] sm:$0xff]
        %v683 = vld [vmem:[%s4 + $0x18] sm:$0xff]
        %v684 = vld [vmem:[%s5] sm:$0xff]
        %v685 = vld [vmem:[%s5 + $0x8] sm:$0xff]
        %v686 = vld [vmem:[%s5 + $0x10] sm:$0xff]
        %v687 = vld [vmem:[%s5 + $0x18] sm:$0xff]
        %689 = vset.pattern.permute.xlu0 0
        %690 = vperm.xlu0 %689, %v684
        %v691 = vpop.permute.xlu0 %690
        %694 = vset.pattern.permute.xlu0 0
        %695 = vperm.xlu0 %694, %v685
        %v696 = vpop.permute.xlu0 %695
        %699 = vset.pattern.permute.xlu0 0
        %700 = vperm.xlu0 %699, %v686
        %v701 = vpop.permute.xlu0 %700
        %704 = vset.pattern.permute.xlu0 0
        %705 = vperm.xlu0 %704, %v687
        %v706 = vpop.permute.xlu0 %705
        %vm708 = vcmask 785408
        %v710 = vsel %vm708, %v680, 0
        %v713 = vsel %vm708, %v681, 0
        %v716 = vsel %vm708, %v682, 0
        %v719 = vsel %vm708, %v683, 0
        %721 = vmatprep.subr.mxu0 0.0
        %722 = vmatpush1.msra.mxu0 %v660
        %723 = vmatprep.subr.mxu0 0.0
        %724 = vmatpush1.msra.mxu0 %v661
        %725 = vmatprep.subr.mxu0 0.0
        %726 = vmatpush1.msra.mxu0 %v662
        %727 = vmatprep.subr.mxu0 0.0
        %728 = vmatpush1.msra.mxu0 %v663
        %729 = vmatprep.subr.mxu0 0.0
        %730 = vmatpush1.msra.mxu0 %v672
        %731 = vmatprep.subr.mxu0 0.0
        %732 = vmatpush1.msra.mxu0 %v673
        %733 = vmatprep.subr.mxu0 0.0
        %734 = vmatpush1.msra.mxu0 %v674
        %735 = vmatprep.subr.mxu0 0.0
        %736 = vmatpush1.msra.mxu0 %v675
        %737 = vmatprep.subr.mxu0 0.0
        %738 = vmatpush1.msra.mxu0 %v676
        %739 = vmatprep.subr.mxu0 0.0
        %740 = vmatpush1.msra.mxu0 %v677
        %741 = vmatprep.subr.mxu0 0.0
        %742 = vmatpush1.msra.mxu0 %v678
        %743 = vmatprep.subr.mxu0 0.0
        %744 = vmatpush1.msra.mxu0 %v679
        %745 = vmatprep.subr.mxu0 0.0
        %746 = vmatpush1.msra.mxu0 0.0
        %747 = vmatprep.subr.mxu0 0.0
        %748 = vmatpush1.msra.mxu0 0.0
        %749 = vmatprep.subr.mxu0 0.0
        %750 = vmatpush1.msra.mxu0 0.0
        %751 = vmatprep.subr.mxu0 0.0
        %752 = vmatpush1.msra.mxu0 0.0
        %753 = vmatprep.subr.mxu0 0.0
        %754 = vmatpush1.msra.mxu0 0.0
        %755 = vmatprep.subr.mxu0 0.0
        %756 = vmatpush1.msra.mxu0 0.0
        %757 = vmatprep.subr.mxu0 0.0
        %758 = vmatpush1.msra.mxu0 0.0
        %759 = vmatprep.subr.mxu0 0.0
        %760 = vmatpush1.msra.mxu0 0.0
        %761 = vmatprep.subr.mxu0 0.0
        %762 = vmatpush1.msra.mxu0 0.0
        %763 = vmatprep.subr.mxu0 0.0
        %764 = vmatpush1.msra.mxu0 0.0
        %765 = vmatprep.subr.mxu0 0.0
        %766 = vmatpush1.msra.mxu0 0.0
        %767 = vmatprep.subr.mxu0 0.0
        %768 = vmatpush1.msra.mxu0 0.0
        %769 = vmatprep.subr.mxu0 0.0
        %770 = vmatpush1.msra.mxu0 0.0
        %771 = vmatprep.subr.mxu0 0.0
        %772 = vmatpush1.msra.mxu0 0.0
        %773 = vmatprep.subr.mxu0 0.0
        %774 = vmatpush1.msra.mxu0 0.0
        %775 = vmatprep.subr.mxu0 0.0
        %776 = vmatpush1.msra.mxu0 0.0
        %777 = vmatprep.subr.mxu0 0.0
        %778 = vmatpush1.msra.mxu0 0.0
        %779 = vmatprep.subr.mxu0 0.0
        %780 = vmatpush1.msra.mxu0 0.0
        %781 = vmatprep.subr.mxu0 0.0
        %782 = vmatpush1.msra.mxu0 0.0
        %783 = vmatprep.subr.mxu0 0.0
        %784 = vmatpush1.msra.mxu0 0.0
        %785 = vmatprep.mubr.f32.mxu0 0.0
        %786 = vmatmul.mubr.f32.gmra.mrb[0].mxu0 %v710
        %v787 = vpop.f32.mrb[0].mxu0
        %v788 = vadd.f32 %v691, %v787
        %v789 = vpop.f32.mrb[0].mxu0
        %790 = vmatprep.mubr.f32.mxu0 0.0
        %791 = vmatmul.mubr.f32.gmra.mrb[0].mxu0 %v713
        %v792 = vpop.f32.mrb[0].mxu0
        %v793 = vadd.f32 %v696, %v792
        %v794 = vpop.f32.mrb[0].mxu0
        %795 = vmatprep.mubr.f32.mxu0 0.0
        %796 = vmatmul.mubr.f32.gmra.mrb[0].mxu0 %v716
        %v797 = vpop.f32.mrb[0].mxu0
        %v798 = vadd.f32 %v701, %v797
        %v799 = vpop.f32.mrb[0].mxu0
        %800 = vmatprep.mubr.f32.mxu0 0.0
        %801 = vmatmul.mubr.f32.gmra.mrb[0].mxu0 %v719
        %v802 = vpop.f32.mrb[0].mxu0
        %v803 = vadd.f32 %v706, %v802
        %v804 = vpop.f32.mrb[0].mxu0
        %805 = vdwg.mxu0
        %v806 = vmax.f32 %v788, 0.0
        %v807 = vmax.f32 %v793, 0.0
        %v808 = vmax.f32 %v798, 0.0
        %v809 = vmax.f32 %v803, 0.0
        %v810 = vld [vmem:[%s6] sm:$0xff]
        %v811 = vld [vmem:[%s6 + $0x8] sm:$0xff]
        %v812 = vld [vmem:[%s6 + $0x10] sm:$0xff]
        %v813 = vld [vmem:[%s6 + $0x18] sm:$0xff]
        %v814 = vld [vmem:[%s6 + $0x20] sm:$0xff]
        %v815 = vld [vmem:[%s6 + $0x28] sm:$0xff]
        %v816 = vld [vmem:[%s6 + $0x30] sm:$0xff]
        %v817 = vld [vmem:[%s6 + $0x38] sm:$0xff]
        %v818 = vld [vmem:[%s7] sm:$0xff]
        %v819 = vld [vmem:[%s7 + $0x8] sm:$0xff]
        %v820 = vld [vmem:[%s7 + $0x10] sm:$0xff]
        %v821 = vld [vmem:[%s7 + $0x18] sm:$0xff]
        %v822 = vld [vmem:[%s7 + $0x20] sm:$0xff]
        %v823 = vld [vmem:[%s7 + $0x28] sm:$0xff]
        %v824 = vld [vmem:[%s7 + $0x30] sm:$0xff]
        %v825 = vld [vmem:[%s7 + $0x38] sm:$0xff]
        %827 = vset.pattern.permute.xlu0 0
        %828 = vperm.xlu0 %827, %v818
        %v829 = vpop.permute.xlu0 %828
        %832 = vset.pattern.permute.xlu0 0
        %833 = vperm.xlu0 %832, %v819
        %v834 = vpop.permute.xlu0 %833
        %837 = vset.pattern.permute.xlu0 0
        %838 = vperm.xlu0 %837, %v820
        %v839 = vpop.permute.xlu0 %838
        %842 = vset.pattern.permute.xlu0 0
        %843 = vperm.xlu0 %842, %v821
        %v844 = vpop.permute.xlu0 %843
        %847 = vset.pattern.permute.xlu0 0
        %848 = vperm.xlu0 %847, %v822
        %v849 = vpop.permute.xlu0 %848
        %852 = vset.pattern.permute.xlu0 0
        %853 = vperm.xlu0 %852, %v823
        %v854 = vpop.permute.xlu0 %853
        %857 = vset.pattern.permute.xlu0 0
        %858 = vperm.xlu0 %857, %v824
        %v859 = vpop.permute.xlu0 %858
        %862 = vset.pattern.permute.xlu0 0
        %863 = vperm.xlu0 %862, %v825
        %v864 = vpop.permute.xlu0 %863
        %vm866 = vcmask 261120
        %v868 = vsel %vm866, %v810, 0
        %v871 = vsel %vm866, %v811, 0
        %v874 = vsel %vm866, %v812, 0
        %v877 = vsel %vm866, %v813, 0
        %v880 = vsel %vm866, %v814, 0
        %v883 = vsel %vm866, %v815, 0
        %v886 = vsel %vm866, %v816, 0
        %v889 = vsel %vm866, %v817, 0
        %891 = vmatprep.subr.mxu0 0.0
        %892 = vmatpush1.msra.mxu0 %v806
        %893 = vmatprep.subr.mxu0 0.0
        %894 = vmatpush1.msra.mxu0 %v807
        %895 = vmatprep.subr.mxu0 0.0
        %896 = vmatpush1.msra.mxu0 %v808
        %897 = vmatprep.subr.mxu0 0.0
        %898 = vmatpush1.msra.mxu0 %v809
        %899 = vmatprep.subr.mxu0 0.0
        %900 = vmatpush1.msra.mxu0 0.0
        %901 = vmatprep.subr.mxu0 0.0
        %902 = vmatpush1.msra.mxu0 0.0
        %903 = vmatprep.subr.mxu0 0.0
        %904 = vmatpush1.msra.mxu0 0.0
        %905 = vmatprep.subr.mxu0 0.0
        %906 = vmatpush1.msra.mxu0 0.0
        %907 = vmatprep.subr.mxu0 0.0
        %908 = vmatpush1.msra.mxu0 0.0
        %909 = vmatprep.subr.mxu0 0.0
        %910 = vmatpush1.msra.mxu0 0.0
        %911 = vmatprep.subr.mxu0 0.0
        %912 = vmatpush1.msra.mxu0 0.0
        %913 = vmatprep.subr.mxu0 0.0
        %914 = vmatpush1.msra.mxu0 0.0
        %915 = vmatprep.subr.mxu0 0.0
        %916 = vmatpush1.msra.mxu0 0.0
        %917 = vmatprep.subr.mxu0 0.0
        %918 = vmatpush1.msra.mxu0 0.0
        %919 = vmatprep.subr.mxu0 0.0
        %920 = vmatpush1.msra.mxu0 0.0
        %921 = vmatprep.subr.mxu0 0.0
        %922 = vmatpush1.msra.mxu0 0.0
        %923 = vmatprep.subr.mxu0 0.0
        %924 = vmatpush1.msra.mxu0 0.0
        %925 = vmatprep.subr.mxu0 0.0
        %926 = vmatpush1.msra.mxu0 0.0
        %927 = vmatprep.subr.mxu0 0.0
        %928 = vmatpush1.msra.mxu0 0.0
        %929 = vmatprep.subr.mxu0 0.0
        %930 = vmatpush1.msra.mxu0 0.0
        %931 = vmatprep.subr.mxu0 0.0
        %932 = vmatpush1.msra.mxu0 0.0
        %933 = vmatprep.subr.mxu0 0.0
        %934 = vmatpush1.msra.mxu0 0.0
        %935 = vmatprep.subr.mxu0 0.0
        %936 = vmatpush1.msra.mxu0 0.0
        %937 = vmatprep.subr.mxu0 0.0
        %938 = vmatpush1.msra.mxu0 0.0
        %939 = vmatprep.subr.mxu0 0.0
        %940 = vmatpush1.msra.mxu0 0.0
        %941 = vmatprep.subr.mxu0 0.0
        %942 = vmatpush1.msra.mxu0 0.0
        %943 = vmatprep.subr.mxu0 0.0
        %944 = vmatpush1.msra.mxu0 0.0
        %945 = vmatprep.subr.mxu0 0.0
        %946 = vmatpush1.msra.mxu0 0.0
        %947 = vmatprep.subr.mxu0 0.0
        %948 = vmatpush1.msra.mxu0 0.0
        %949 = vmatprep.subr.mxu0 0.0
        %950 = vmatpush1.msra.mxu0 0.0
        %951 = vmatprep.subr.mxu0 0.0
        %952 = vmatpush1.msra.mxu0 0.0
        %953 = vmatprep.subr.mxu0 0.0
        %954 = vmatpush1.msra.mxu0 0.0
        %955 = vmatprep.mubr.f32.mxu0 0.0
        %956 = vmatmul.mubr.f32.gmra.mrb[0].mxu0 %v868
        %v957 = vpop.f32.mrb[0].mxu0
        %v958 = vadd.f32 %v829, %v957
        %v959 = vpop.f32.mrb[0].mxu0
        %960 = vmatprep.mubr.f32.mxu0 0.0
        %961 = vmatmul.mubr.f32.gmra.mrb[0].mxu0 %v871
        %v962 = vpop.f32.mrb[0].mxu0
        %v963 = vadd.f32 %v834, %v962
        %v964 = vpop.f32.mrb[0].mxu0
        %965 = vmatprep.mubr.f32.mxu0 0.0
        %966 = vmatmul.mubr.f32.gmra.mrb[0].mxu0 %v874
        %v967 = vpop.f32.mrb[0].mxu0
        %v968 = vadd.f32 %v839, %v967
        %v969 = vpop.f32.mrb[0].mxu0
        %970 = vmatprep.mubr.f32.mxu0 0.0
        %971 = vmatmul.mubr.f32.gmra.mrb[0].mxu0 %v877
        %v972 = vpop.f32.mrb[0].mxu0
        %v973 = vadd.f32 %v844, %v972
        %v974 = vpop.f32.mrb[0].mxu0
        %975 = vmatprep.mubr.f32.mxu0 0.0
        %976 = vmatmul.mubr.f32.gmra.mrb[0].mxu0 %v880
        %v977 = vpop.f32.mrb[0].mxu0
        %v978 = vadd.f32 %v849, %v977
        %v979 = vpop.f32.mrb[0].mxu0
        %980 = vmatprep.mubr.f32.mxu0 0.0
        %981 = vmatmul.mubr.f32.gmra.mrb[0].mxu0 %v883
        %v982 = vpop.f32.mrb[0].mxu0
        %v983 = vadd.f32 %v854, %v982
        %v984 = vpop.f32.mrb[0].mxu0
        %985 = vmatprep.mubr.f32.mxu0 0.0
        %986 = vmatmul.mubr.f32.gmra.mrb[0].mxu0 %v886
        %v987 = vpop.f32.mrb[0].mxu0
        %v988 = vadd.f32 %v859, %v987
        %v989 = vpop.f32.mrb[0].mxu0
        %990 = vmatprep.mubr.f32.mxu0 0.0
        %991 = vmatmul.mubr.f32.gmra.mrb[0].mxu0 %v889
        %v992 = vpop.f32.mrb[0].mxu0
        %v993 = vadd.f32 %v864, %v992
        %v994 = vpop.f32.mrb[0].mxu0
        %995 = vdwg.mxu0
        %v996 = vmax.f32 %v958, 0.0
        %v997 = vmax.f32 %v963, 0.0
        %v998 = vmax.f32 %v968, 0.0
        %v999 = vmax.f32 %v973, 0.0
        %v1000 = vmax.f32 %v978, 0.0
        %v1001 = vmax.f32 %v983, 0.0
        %v1002 = vmax.f32 %v988, 0.0
        %v1003 = vmax.f32 %v993, 0.0
        %v1004 = vld [vmem:[%s8] sm:$0xf]
        %v1005 = vld [vmem:[%s9] sm:$0xf]
        %1007 = vset.pattern.permute.xlu0 0
        %1008 = vperm.xlu0 %1007, %v1005
        %v1009 = vpop.permute.xlu0 %1008
        %vm1011 = vcmask 523264
        %v1013 = vsel %vm1011, %v1004, 0
        %1015 = vmatprep.subr.mxu0 0.0
        %1016 = vmatpush1.msra.mxu0 %v996
        %1017 = vmatprep.subr.mxu0 0.0
        %1018 = vmatpush1.msra.mxu0 %v997
        %1019 = vmatprep.subr.mxu0 0.0
        %1020 = vmatpush1.msra.mxu0 %v998
        %1021 = vmatprep.subr.mxu0 0.0
        %1022 = vmatpush1.msra.mxu0 %v999
        %1023 = vmatprep.subr.mxu0 0.0
        %1024 = vmatpush1.msra.mxu0 %v1000
        %1025 = vmatprep.subr.mxu0 0.0
        %1026 = vmatpush1.msra.mxu0 %v1001
        %1027 = vmatprep.subr.mxu0 0.0
        %1028 = vmatpush1.msra.mxu0 %v1002
        %1029 = vmatprep.subr.mxu0 0.0
        %1030 = vmatpush1.msra.mxu0 %v1003
        %1031 = vmatprep.subr.mxu0 0.0
        %1032 = vmatpush1.msra.mxu0 0.0
        %1033 = vmatprep.subr.mxu0 0.0
        %1034 = vmatpush1.msra.mxu0 0.0
        %1035 = vmatprep.subr.mxu0 0.0
        %1036 = vmatpush1.msra.mxu0 0.0
        %1037 = vmatprep.subr.mxu0 0.0
        %1038 = vmatpush1.msra.mxu0 0.0
        %1039 = vmatprep.subr.mxu0 0.0
        %1040 = vmatpush1.msra.mxu0 0.0
        %1041 = vmatprep.subr.mxu0 0.0
        %1042 = vmatpush1.msra.mxu0 0.0
        %1043 = vmatprep.subr.mxu0 0.0
        %1044 = vmatpush1.msra.mxu0 0.0
        %1045 = vmatprep.subr.mxu0 0.0
        %1046 = vmatpush1.msra.mxu0 0.0
        %1047 = vmatprep.subr.mxu0 0.0
        %1048 = vmatpush1.msra.mxu0 0.0
        %1049 = vmatprep.subr.mxu0 0.0
        %1050 = vmatpush1.msra.mxu0 0.0
        %1051 = vmatprep.subr.mxu0 0.0
        %1052 = vmatpush1.msra.mxu0 0.0
        %1053 = vmatprep.subr.mxu0 0.0
        %1054 = vmatpush1.msra.mxu0 0.0
        %1055 = vmatprep.subr.mxu0 0.0
        %1056 = vmatpush1.msra.mxu0 0.0
        %1057 = vmatprep.subr.mxu0 0.0
        %1058 = vmatpush1.msra.mxu0 0.0
        %1059 = vmatprep.subr.mxu0 0.0
        %1060 = vmatpush1.msra.mxu0 0.0
        %1061 = vmatprep.subr.mxu0 0.0
        %1062 = vmatpush1.msra.mxu0 0.0
        %1063 = vmatprep.subr.mxu0 0.0
        %1064 = vmatpush1.msra.mxu0 0.0
        %1065 = vmatprep.subr.mxu0 0.0
        %1066 = vmatpush1.msra.mxu0 0.0
        %1067 = vmatprep.subr.mxu0 0.0
        %1068 = vmatpush1.msra.mxu0 0.0
        %1069 = vmatprep.subr.mxu0 0.0
        %1070 = vmatpush1.msra.mxu0 0.0
        %1071 = vmatprep.subr.mxu0 0.0
        %1072 = vmatpush1.msra.mxu0 0.0
        %1073 = vmatprep.subr.mxu0 0.0
        %1074 = vmatpush1.msra.mxu0 0.0
        %1075 = vmatprep.subr.mxu0 0.0
        %1076 = vmatpush1.msra.mxu0 0.0
        %1077 = vmatprep.subr.mxu0 0.0
        %1078 = vmatpush1.msra.mxu0 0.0
        %1079 = vmatprep.mubr.f32.mxu0 0.0
        %1080 = vmatmul.mubr.f32.gmra.mrb[0].mxu0 %v1013
        %v1081 = vpop.f32.mrb[0].mxu0
        %v1082 = vadd.f32 %v1009, %v1081
        %v1083 = vpop.f32.mrb[0].mxu0
        %1084 = vdwg.mxu0
        %1085 = vst [vmem:[%s533] sm:$0xf] %v1082
        %s1086 = sand.u32 %s265, 1
        %s1087 = scalar_lea.sflag [#allocation6], %s1086
        %s1088 = sand.u32 %s265, 1
        %s1089 = smul.addr %s1088, 4
        %s1090 = scalar_lea.vmem [#allocation7], %s1089
        // Predicated region
        $region147: #{tpu_custom_call.1} parent=133 // pred_check
          %p1091 = pneg %p275
        $region148: #{tpu_custom_call.1} parent=133 // pred_check_branch
          %1093 = sbr.rel (%p1091) target = $region150
        $region149: #{tpu_custom_call.1} parent=133 // pred_region
          %s1095 = ssub.s32 64, 64
          %1096 = vsyncadd %s1087, %s1095
          %s1097 = smul.addr %s27, 64
          %s1098 = scalar_lea.hbm %s10, %s1097
          %s1100 = sshll.u32 %s1090, 4
          %s1101 = int_to_ptr.vmem [resolvable:$true] %s1100
          %1103 = dma.vmem_to_hbm [thread:$0]  %s1101, 64, %s1098, %s1087
        $region150: #{tpu_custom_call.1} parent=133 // pred_fallthru
          _
      $region134: #{tpu_custom_call.1} parent=5 // pred_fallthru
        _
      %p1104 = scmp.le.s32.totalorder 2, %s22
      // Predicated region
      $region151: #{tpu_custom_call.1} parent=5 // pred_check
        %p1105 = pneg %p1104
      $region152: #{tpu_custom_call.1} parent=5 // pred_check_branch
        %1107 = sbr.rel (%p1105) target = $region154
      $region153: #{tpu_custom_call.1} parent=5 // pred_region
        %s1108 = ssub.s32 %s22, 2
        // Predicated region
        $region155: #{tpu_custom_call.1} parent=153 // pred_check
          %p1109 = pneg %p281
        $region156: #{tpu_custom_call.1} parent=153 // pred_check_branch
          %1111 = sbr.rel (%p1109) target = $region158
        $region157: #{tpu_custom_call.1} parent=153 // pred_region
          %s1112 = sand.u32 %s266, 1
          %s1113 = scalar_lea.sflag [#allocation6], %s1112
          %s1114 = sand.u32 %s266, 1
          %s1115 = smul.addr %s1114, 4
          %s1116 = scalar_lea.vmem [#allocation7], %s1115
          %1117 = dma.done %s1113, 64
        $region158: #{tpu_custom_call.1} parent=153 // pred_fallthru
          _
      $region154: #{tpu_custom_call.1} parent=5 // pred_fallthru
        _
    $region6: #{tpu_custom_call.1} parent=1 // loop_footer
      %s26 = sadd.s32 1, %s22
    $region7: #{tpu_custom_call.1} parent=1 // loop_footer_branch
      %21 = sbr.rel target = $region3
    $region8: #{tpu_custom_call.1} parent=1 // loop_exit
      _
    %1118 = vsyncpa [#allocation5], 1
    %s1119 = scalar_lea.sflag [#allocation5], 1
    %1120 = vsyncpa %s1119, 1
    %1121 = vsyncpa [#allocation6], 1
    %s1122 = scalar_lea.sflag [#allocation6], 1
    %1123 = vsyncpa %s1122, 1

</llo_original>
